<compile_context>
chip_gen: v6e
topology: v6e:2x2x1
jax: 0.10.0
libtpu: 0.0.40
codegen_flags: <defaults>
</compile_context>

<pallas_src>
import functools

import jax
import jax.numpy as jnp
from jax.experimental import pallas as pl
from jax.experimental.pallas import tpu as pltpu


def _kl_loss_kernel(pred_ref, label_ref, out_ref, *,
                    batch_size, tile_rows, mask_tail):
    pred = pred_ref[...].astype(jnp.float32)
    lab = label_ref[...].astype(jnp.float32) * 10.0  # temperature

    # Only the per-row log-sum-exp of the prediction is needed (see algebra).
    m1 = jnp.max(pred, axis=1, keepdims=True)
    z1 = pred - m1
    lse1 = jnp.log(jnp.sum(jnp.exp(z1), axis=1, keepdims=True))

    # Un-normalized softmax of the scaled label (normalize per row below).
    m2 = jnp.max(lab, axis=1, keepdims=True)
    z2 = lab - m2
    e2 = jnp.exp(z2)
    s2 = jnp.sum(e2, axis=1, keepdims=True)

    # Per-row KL with folded log-softmaxes (no (tile, C) log_p1/log_p2 temps):
    #   sum_c p2*(log_p2 - log_p1) = (1/s2) * sum_c e2*(z2 - z1) + lse1 - log(s2)
    # Underflowed e2 == 0 contributes exactly 0 (matches PyTorch 0*log(0)=0).
    num = jnp.sum(e2 * (z2 - z1), axis=1, keepdims=True)        # (tb, 1)
    row_kl = num * pl.reciprocal(s2, approx=False) + (lse1 - jnp.log(s2))

    if mask_tail:  # compiled in only when B % tile_rows != 0
        rows = (pl.program_id(0) * tile_rows
                + jax.lax.broadcasted_iota(jnp.int32, row_kl.shape, 0))
        row_kl = jnp.where(rows < batch_size, row_kl, 0.0)

    out_ref[...] = row_kl


def _vmem_budget():
    """(tile_budget_bytes, vmem_limit_bytes) per TPU generation.

    v5e/v6e: 128 MiB VMEM -> big tiles amortize the ~0.35us/grid-step overhead.
    v7x:     64 MiB VMEM  -> keep the scoped limit <= 32 MiB.
    Falls back to the conservative (v7x-safe) numbers if the query fails.
    """
    phys = 0
    try:
        phys = int(pltpu.get_tpu_info().vmem_capacity_bytes)
    except Exception:
        phys = 0
    if phys >= 96 * 1024 * 1024:          # v5e / v6e (128 MiB physical)
        return 40 * 1024 * 1024, 64 * 1024 * 1024
    return 20 * 1024 * 1024, 32 * 1024 * 1024


def _choose_tile_rows(batch, classes, pred_dtype, label_dtype,
                      budget_bytes, max_rows=2048):
    in_bytes = jnp.dtype(pred_dtype).itemsize + jnp.dtype(label_dtype).itemsize
    # 2 pipeline buffers per input + ~4 live (tile, C) f32 temporaries.
    bytes_per_row = (2 * in_bytes + 4 * 4) * classes
    gran = 16 if in_bytes < 8 else 8      # sub-32-bit inputs pack 16 sublanes
    tb = max(gran, budget_bytes // bytes_per_row)
    tb = min(tb, max_rows)
    padded_batch = ((batch + gran - 1) // gran) * gran
    tb = min(tb, padded_batch)
    return max(gran, (tb // gran) * gran)


def kl_loss_pallas(prediction: jax.Array, label: jax.Array,
                   tile_rows: int | None = None) -> jax.Array:
    assert prediction.shape == label.shape and prediction.ndim == 2
    B, C = prediction.shape
    budget, vmem_limit = _vmem_budget()
    tb = tile_rows if tile_rows is not None else _choose_tile_rows(
        B, C, prediction.dtype, label.dtype, budget)
    num_tiles = (B + tb - 1) // tb
    padded_b = num_tiles * tb
    mask_tail = (B % tb) != 0

    kernel = functools.partial(_kl_loss_kernel, batch_size=B,
                               tile_rows=tb, mask_tail=mask_tail)

    row_kl = pl.pallas_call(
        kernel,
        out_shape=jax.ShapeDtypeStruct((padded_b, 1), jnp.float32),
        grid_spec=pltpu.PrefetchScalarGridSpec(
            num_scalar_prefetch=0,
            grid=(num_tiles,),
            in_specs=[
                pl.BlockSpec((tb, C), lambda i: (i, 0)),
                pl.BlockSpec((tb, C), lambda i: (i, 0)),
            ],
            out_specs=pl.BlockSpec((tb, 1), lambda i: (i, 0)),
        ),
        compiler_params=pltpu.CompilerParams(
            dimension_semantics=("parallel",),   # independent tiles -> megacore
            vmem_limit_bytes=vmem_limit,
        ),
    )(prediction, label)

    # KLDivLoss(reduction='mean') over B*C elements, then * batch_size -> / C.
    return jnp.sum(row_kl) / jnp.float32(C)


def _kl_loss_ref(prediction, label):
    # pure-JAX reference mirroring the PyTorch module
    log_p1 = jax.nn.log_softmax(prediction.astype(jnp.float32), axis=1)
    p2 = jax.nn.softmax(label.astype(jnp.float32) * 10.0, axis=1)
    pointwise = jnp.where(p2 > 0, p2 * (jnp.log(p2) - log_p1), 0.0)
    B = prediction.shape[0]
    return jnp.mean(pointwise) * B


if __name__ == "__main__":
    key = jax.random.PRNGKey(0)
    k1, k2, k3, k4 = jax.random.split(key, 4)

    # Small shapes consistent with the module: (batch, classes) logits.
    B, C = 8, 128
    prediction = jax.random.normal(k1, (B, C), dtype=jnp.float32)
    label = jax.random.normal(k2, (B, C), dtype=jnp.float32)

    loss = jax.block_until_ready(kl_loss_pallas(prediction, label))
    ref = _kl_loss_ref(prediction, label)
    assert jnp.allclose(loss, ref, rtol=1e-5, atol=1e-5), (loss, ref)

    # Multi-tile path with a masked partial last tile (B not a tile multiple).
    B2, C2 = 13, 256
    pred2 = jax.random.normal(k3, (B2, C2), dtype=jnp.float32)
    lab2 = jax.random.normal(k4, (B2, C2), dtype=jnp.float32)
    loss2 = jax.block_until_ready(kl_loss_pallas(pred2, lab2, tile_rows=8))
    ref2 = _kl_loss_ref(pred2, lab2)
    assert jnp.allclose(loss2, ref2, rtol=1e-5, atol=1e-5), (loss2, ref2)

    # bf16 inputs (halves HBM traffic); kernel upcasts to f32 internally.
    pred3 = pred2.astype(jnp.bfloat16)
    lab3 = lab2.astype(jnp.bfloat16)
    loss3 = jax.block_until_ready(kl_loss_pallas(pred3, lab3))
    ref3 = _kl_loss_ref(pred3, lab3)
    assert jnp.allclose(loss3, ref3, rtol=1e-3, atol=1e-3), (loss3, ref3)

    print("KERNEL_OK")
</pallas_src>

<mosaic_0001>
module attributes {stable_mosaic.version = 11 : i64} {
  func.func @_kl_loss_kernel(%arg0: i32, %arg1: memref<8x128xf32, #tpu.memory_space<vmem>>, %arg2: memref<8x128xf32, #tpu.memory_space<vmem>>, %arg3: memref<8x1xf32, #tpu.memory_space<vmem>>) attributes {dimension_semantics = [#tpu.dimension_semantics<parallel>], iteration_bounds = array<i64: 1>, scalar_prefetch = 0 : i64, scratch_operands = 0 : i64, tpu.core_type = #tpu.core_type<tc>, window_params = [{transform_indices = @transform_0, window_bounds = array<i64: 8, 128>}, {transform_indices = @transform_1, window_bounds = array<i64: 8, 128>}, {transform_indices = @transform_2, window_bounds = array<i64: 8, 1>}]} {
    %c0 = arith.constant 0 : index
    %c0_0 = arith.constant 0 : index
    %0 = vector.load %arg1[%c0, %c0_0] : memref<8x128xf32, #tpu.memory_space<vmem>>, vector<8x128xf32>
    %c0_1 = arith.constant 0 : index
    %c0_2 = arith.constant 0 : index
    %1 = vector.load %arg2[%c0_1, %c0_2] : memref<8x128xf32, #tpu.memory_space<vmem>>, vector<8x128xf32>
    %cst = arith.constant 1.000000e+01 : f32
    %2 = vector.broadcast %cst : f32 to vector<8x128xf32>
    %3 = arith.mulf %1, %2 : vector<8x128xf32>
    %cst_3 = arith.constant dense<0xFF800000> : vector<8xf32>
    %4 = vector.multi_reduction <maximumf>, %0, %cst_3 [1] : vector<8x128xf32> to vector<8xf32>
    %5 = vector.shape_cast %4 : vector<8xf32> to vector<8x1xf32>
    %6 = vector.broadcast %5 : vector<8x1xf32> to vector<8x128xf32>
    %7 = arith.subf %0, %6 : vector<8x128xf32>
    %8 = math.exp %7 : vector<8x128xf32>
    %cst_4 = arith.constant dense<0.000000e+00> : vector<8xf32>
    %9 = vector.multi_reduction <add>, %8, %cst_4 [1] : vector<8x128xf32> to vector<8xf32>
    %10 = vector.shape_cast %9 : vector<8xf32> to vector<8x1xf32>
    %11 = math.log %10 : vector<8x1xf32>
    %cst_5 = arith.constant dense<0xFF800000> : vector<8xf32>
    %12 = vector.multi_reduction <maximumf>, %3, %cst_5 [1] : vector<8x128xf32> to vector<8xf32>
    %13 = vector.shape_cast %12 : vector<8xf32> to vector<8x1xf32>
    %14 = vector.broadcast %13 : vector<8x1xf32> to vector<8x128xf32>
    %15 = arith.subf %3, %14 : vector<8x128xf32>
    %16 = math.exp %15 : vector<8x128xf32>
    %cst_6 = arith.constant dense<0.000000e+00> : vector<8xf32>
    %17 = vector.multi_reduction <add>, %16, %cst_6 [1] : vector<8x128xf32> to vector<8xf32>
    %18 = vector.shape_cast %17 : vector<8xf32> to vector<8x1xf32>
    %19 = arith.subf %15, %7 : vector<8x128xf32>
    %20 = arith.mulf %16, %19 : vector<8x128xf32>
    %cst_7 = arith.constant dense<0.000000e+00> : vector<8xf32>
    %21 = vector.multi_reduction <add>, %20, %cst_7 [1] : vector<8x128xf32> to vector<8xf32>
    %22 = vector.shape_cast %21 : vector<8xf32> to vector<8x1xf32>
    %23 = tpu.reciprocal %18 : vector<8x1xf32> -> vector<8x1xf32>
    %24 = arith.mulf %22, %23 : vector<8x1xf32>
    %25 = math.log %18 : vector<8x1xf32>
    %26 = arith.subf %11, %25 : vector<8x1xf32>
    %27 = arith.addf %24, %26 : vector<8x1xf32>
    %c0_8 = arith.constant 0 : index
    %c0_9 = arith.constant 0 : index
    %28 = vector.load %arg3[%c0_8, %c0_9] : memref<8x1xf32, #tpu.memory_space<vmem>>, vector<8x1xf32>
    tpu.vector_store %arg3[%c0_8, %c0_9], %27 {strides = array<i32>} : memref<8x1xf32, #tpu.memory_space<vmem>>, vector<8x1xf32>,
    return
  }
  func.func @transform_0(%arg0: i32) -> (i32, i32) {
    %c0_i32 = arith.constant 0 : i32
    %c0_i32_0 = arith.constant 0 : i32
    return %arg0, %c0_i32 : i32, i32
  }
  func.func @transform_1(%arg0: i32) -> (i32, i32) {
    %c0_i32 = arith.constant 0 : i32
    %c0_i32_0 = arith.constant 0 : i32
    return %arg0, %c0_i32 : i32, i32
  }
  func.func @transform_2(%arg0: i32) -> (i32, i32) {
    %c0_i32 = arith.constant 0 : i32
    %c0_i32_0 = arith.constant 0 : i32
    return %arg0, %c0_i32 : i32, i32
  }
}

</mosaic_0001>

<llo_original>
// kernel: tpu_custom_call.1
$region0: #{tpu_custom_call.1}
  #allocation0 [shape = 'u32[]', space=smem, size = 0x4, offset = 0x4, fixed_abs, tag = 'smem constant byte address 0x4 - core index']
  #allocation1 [shape = 'u32[144,128]{1,0:T(1,128)}', space=vmem, size = 0x12000, scoped, tag = 'internal scratch']
  %s0 = inlined_call_operand.hbm [shape: f32[8,128], index: 0, kind: input, shape index: {}]
  %s1 = inlined_call_operand.hbm [shape: f32[8,128], index: 1, kind: input, shape index: {}]
  %s2 = inlined_call_operand.vmem [shape: f32[8,1], index: 2, kind: output, shape index: {}]
  %s3 = sld [smem:[#allocation0]]
  $region26: #{tpu_custom_call.1} parent=0
    _
  %s5 = ssub.s32 1, %s3
  %s6 = scalar_select 0, %s5, %s3
  $region1: #{tpu_custom_call.1} parent=0
    #allocation2 [shape = 'u8[4096]{0}', space=vmem, size = 0x1000, scoped, tag = 'input window, operand 0, single buffered']
    #allocation3 [shape = 's32[1]{0}', space=sflag, size = 0x4, scoped, tag = 'scoped memory for tpu_custom_call.1']
    #allocation4 [shape = 'u8[4096]{0}', space=vmem, size = 0x1000, scoped, tag = 'input window, operand 1, single buffered']
    #allocation5 [shape = 's32[1]{0}', space=sflag, size = 0x4, scoped, tag = 'scoped memory for tpu_custom_call.1']
    %7 = vsyncpa [#allocation3], 0
    %8 = vsyncpa [#allocation5], 0
    // Predicated region
    $region2: #{tpu_custom_call.1} parent=1 // pred_check
      _
    $region3: #{tpu_custom_call.1} parent=1 // pred_check_branch
      %10 = sbr.rel (0) target = $region5
    $region4: #{tpu_custom_call.1} parent=1 // pred_region
      %s12 = ssub.s32 128, 128
      %13 = vsyncadd [#allocation3], %s12
      %s15 = sshll.u32 [#allocation2], 4
      %s16 = int_to_ptr.vmem [resolvable:$true] %s15
      %18 = dma.hbm_to_vmem [thread:$0]  %s0, 128, %s16, [#allocation3]
    $region5: #{tpu_custom_call.1} parent=1 // pred_fallthru
      _
    // Predicated region
    $region6: #{tpu_custom_call.1} parent=1 // pred_check
      _
    $region7: #{tpu_custom_call.1} parent=1 // pred_check_branch
      %20 = sbr.rel (0) target = $region9
    $region8: #{tpu_custom_call.1} parent=1 // pred_region
      %s22 = ssub.s32 128, 128
      %23 = vsyncadd [#allocation5], %s22
      %s25 = sshll.u32 [#allocation4], 4
      %s26 = int_to_ptr.vmem [resolvable:$true] %s25
      %28 = dma.hbm_to_vmem [thread:$0]  %s1, 128, %s26, [#allocation5]
    $region9: #{tpu_custom_call.1} parent=1 // pred_fallthru
      _
    // Predicated region
    $region10: #{tpu_custom_call.1} parent=1 // pred_check
      _
    $region11: #{tpu_custom_call.1} parent=1 // pred_check_branch
      %30 = sbr.rel (0) target = $region13
    $region12: #{tpu_custom_call.1} parent=1 // pred_region
      %31 = dma.done [#allocation3], 128
    $region13: #{tpu_custom_call.1} parent=1 // pred_fallthru
      _
    // Predicated region
    $region14: #{tpu_custom_call.1} parent=1 // pred_check
      _
    $region15: #{tpu_custom_call.1} parent=1 // pred_check_branch
      %33 = sbr.rel (0) target = $region17
    $region16: #{tpu_custom_call.1} parent=1 // pred_region
      %34 = dma.done [#allocation5], 128
    $region17: #{tpu_custom_call.1} parent=1 // pred_fallthru
      _
    %v35 = vld [vmem:[#allocation2] sm:$0xff]
    %v36 = vld [vmem:[#allocation4] sm:$0xff]
    %v37 = vmul.f32 %v36, 10.0
    %38 = vmax.xlane.f32.xlu0 %v35
    %v39 = vpop.xlane.xlu0 %38
    %v40 = vsub.f32 %v35, %v39
    %v41 = vmul.f32 %v40, 1.442695
    %v42 = vpow.pop %v41
    %43 = vadd.xlane.f32.xlu0 %v42
    %v44 = vpop.xlane.xlu0 %43
    %v45 = vlog2.pop %v44
    %v46 = vmul.f32 %v45, 0.6931472
    %47 = vmax.xlane.f32.xlu0 %v37
    %v48 = vpop.xlane.xlu0 %47
    %v49 = vsub.f32 %v37, %v48
    %v50 = vmul.f32 %v49, 1.442695
    %v51 = vpow.pop %v50
    %52 = vadd.xlane.f32.xlu0 %v51
    %v53 = vpop.xlane.xlu0 %52
    %v54 = vsub.f32 %v49, %v40
    %v55 = vmul.f32 %v51, %v54
    %56 = vadd.xlane.f32.xlu0 %v55
    %v57 = vpop.xlane.xlu0 %56
    %v58 = vrcp.pop %v53
    %v59 = vmul.f32 %v57, %v58
    %v60 = vlog2.pop %v53
    %v61 = vmul.f32 %v60, 0.6931472
    %v62 = vsub.f32 %v46, %v61
    %v63 = vadd.f32 %v59, %v62
    %vm64 = vcmask 7168
    %65 = vst.msk [vmem:[%s2] sm:$0xff] %vm64, %v63
    // Predicated region
    $region18: #{tpu_custom_call.1} parent=1 // pred_check
      _
    $region19: #{tpu_custom_call.1} parent=1 // pred_check_branch
      %67 = sbr.rel (0) target = $region21
    $region20: #{tpu_custom_call.1} parent=1 // pred_region
      _
    $region21: #{tpu_custom_call.1} parent=1 // pred_fallthru
      _
    // Predicated region
    $region22: #{tpu_custom_call.1} parent=1 // pred_check
      _
    $region23: #{tpu_custom_call.1} parent=1 // pred_check_branch
      %69 = sbr.rel (0) target = $region25
    $region24: #{tpu_custom_call.1} parent=1 // pred_region
      _
    $region25: #{tpu_custom_call.1} parent=1 // pred_fallthru
      _
    %70 = vsyncpa [#allocation3], 1
    %71 = vsyncpa [#allocation5], 1

</llo_original>
